<compile_context>
chip_gen: v5e
topology: v5e:2x2
jax: 0.10.0
libtpu: 0.0.40
codegen_flags: <defaults>
</compile_context>

<pallas_src>
import jax
import jax.numpy as jnp
from jax.experimental import pallas as pl
from jax.experimental.pallas import tpu as pltpu


def _round_up(v: int, m: int) -> int:
    return ((v + m - 1) // m) * m


def _dup_by_duration_kernel(nframes_ref,   # SMEM (B,) int32 : valid frames per batch
                            x_ref,         # VMEM (1, C, T_text)          x.dtype
                            bounds_ref,    # VMEM (1, T_text, 2) f32      [:,:,0]=lo, [:,:,1]=hi
                            o_ref):        # VMEM (1, C, TF)              x.dtype
    b = pl.program_id(0)
    f = pl.program_id(1)
    TF = o_ref.shape[2]
    tile_start = f * TF

    @pl.when(tile_start >= nframes_ref[b])
    def _zero_tile():
        # Frames beyond the (masked) total duration are all-zero: skip the work.
        # TODO(synk): for heavily ragged batches, enumerate only valid (b, tile)
        # pairs via a scalar-prefetched flattened grid + input_output_aliases.
        o_ref[...] = jnp.zeros_like(o_ref)

    @pl.when(tile_start < nframes_ref[b])
    def _compute_tile():
        x = x_ref[0]                         # (C, T_text)
        bounds = bounds_ref[0]               # (T_text, 2) f32
        lo = bounds[:, 0:1]                  # (T_text, 1)
        hi = bounds[:, 1:2]                  # (T_text, 1)

        # Row of frame indices for this tile; the comparisons below broadcast it
        # against the (T_text, 1) boundary columns to build attn in (K, N)
        # orientation for the matmul (no XLU transpose, no full-tile iota/cast).
        t_row = (jax.lax.broadcasted_iota(jnp.int32, (1, TF), 1)
                 + tile_start).astype(jnp.float32)                    # (1, TF)

        # One-hot "which token owns this frame" matrix, 0/1 exact in x.dtype.
        attn = ((t_row >= lo) & (t_row < hi)).astype(x.dtype)          # (T_text, TF)

        # (C, T_text) @ (T_text, TF) -> (C, TF) on the MXU.
        out = jnp.dot(x, attn, preferred_element_type=jnp.float32)
        o_ref[0] = out.astype(o_ref.dtype)


def duplicate_by_duration(x, w, x_mask=None, y_mask=None, t_feat=None, tf_tile=512):
    """JAX / Pallas equivalent of DuplicateByDuration.forward.

    Args:
        x: (B, C, T_text) hidden states.
        w: (B, T_text) token durations (float, non-negative).
        x_mask: optional (B, T_text) token mask.
        y_mask: optional (B, T_feat) frame mask (assumed to be a prefix mask,
                i.e. sequence_mask(y_lengths), as produced by VITS/FastSpeech).
        t_feat: static number of output frames; required when y_mask is None and
                this is called under jit (otherwise derived via a host sync).
    Returns:
        (B, C, T_feat) expanded hidden states.
    """
    B, C, T_text = x.shape
    assert tf_tile % 128 == 0, "frame tile must be a multiple of 128 lanes"

    if x_mask is None:
        x_mask = jnp.ones((B, T_text), dtype=jnp.float32)
    wm = (w * x_mask).astype(jnp.float32)
    y_lengths = jnp.sum(wm, axis=-1)                                  # (B,)

    # Cumulative duration boundaries.  lo is the *shifted* cumsum so that the
    # [lo_i, hi_i) intervals partition exactly (no float drift at boundaries),
    # matching the padded-cumsum generate_path of the PyTorch implementation.
    hi = jnp.cumsum(wm, axis=-1)                                      # (B, T_text)
    lo = jnp.concatenate([jnp.zeros((B, 1), jnp.float32), hi[:, :-1]], axis=-1)

    if y_mask is None:
        if t_feat is None:
            # NOTE: host sync; pass t_feat explicitly when calling under jit.
            t_feat = int(jnp.max(jnp.ceil(y_lengths)))
        T_feat = int(t_feat)
        # Implied prefix mask (t < y_length) is already encoded by attn itself.
        hi_eff = hi
        n_frames = jnp.ceil(y_lengths).astype(jnp.int32)              # (B,)
    else:
        T_feat = int(y_mask.shape[-1])
        # Fold y_mask into the upper boundary: exact for prefix masks.
        # TODO(synk): arbitrary (non-prefix) y_mask patterns would need the
        # explicit attn * y_mask multiply back inside the kernel.
        n_frames_f = jnp.sum(y_mask.astype(jnp.float32), axis=-1)     # (B,)
        hi_eff = jnp.minimum(hi, n_frames_f[:, None])
        n_frames = n_frames_f.astype(jnp.int32)

    # Single lane-contiguous boundaries array: (B, T_text, 2), f32.
    bounds = jnp.stack([lo, hi_eff], axis=-1)

    # Frame tiling: 128-aligned tile, pad T_feat so every output block is full
    # (lane-dense unmasked stores); slice the padding off afterwards.
    TF = min(tf_tile, _round_up(max(T_feat, 1), 128))
    T_pad = _round_up(max(T_feat, 1), TF)
    n_tiles = T_pad // TF

    # VMEM budget estimate (double-buffered inputs/outputs + attn/acc scratch),
    # with generous headroom; capped to stay within v7x's 64 MiB physical VMEM.
    itemsize = jnp.dtype(x.dtype).itemsize
    pad8 = lambda v: _round_up(v, 8)
    vmem_est = (2 * pad8(C) * _round_up(T_text, 128) * itemsize       # x (2 bufs)
                + 2 * pad8(T_text) * 128 * 4                          # bounds (lane-padded)
                + 2 * pad8(C) * TF * itemsize                         # out (2 bufs)
                + pad8(T_text) * TF * max(itemsize, 4)                # attn tile
                + pad8(C) * TF * 4)                                   # f32 matmul acc
    vmem_limit = int(min(max(4 * vmem_est + (8 << 20), 32 << 20), 64 << 20))

    # TODO(synk): on v7x, add pipeline_mode=pl.Buffered(1) to the x/bounds specs
    # when C*T_text is large (they only change on the batch axis), and consider
    # splitting the frame axis (not B) across the two TensorCores.
    out = pl.pallas_call(
        _dup_by_duration_kernel,
        out_shape=jax.ShapeDtypeStruct((B, C, T_pad), x.dtype),
        grid_spec=pltpu.PrefetchScalarGridSpec(
            num_scalar_prefetch=1,
            grid=(B, n_tiles),
            in_specs=[
                pl.BlockSpec((1, C, T_text), lambda b, f, nf: (b, 0, 0)),
                pl.BlockSpec((1, T_text, 2), lambda b, f, nf: (b, 0, 0)),
            ],
            out_specs=pl.BlockSpec((1, C, TF), lambda b, f, nf: (b, 0, f)),
        ),
        compiler_params=pltpu.CompilerParams(
            dimension_semantics=("parallel", "parallel"),
            vmem_limit_bytes=vmem_limit),
    )(n_frames, x, bounds)

    if T_pad != T_feat:
        out = out[:, :, :T_feat]
    return out


def _reference(x, w, x_mask, T_feat):
    """Pure-JAX reference of the same semantics (for verification)."""
    wm = w * x_mask
    hi = jnp.cumsum(wm, axis=-1)                                      # (B, T_text)
    lo = jnp.concatenate([jnp.zeros_like(hi[:, :1]), hi[:, :-1]], axis=-1)
    t = jnp.arange(T_feat, dtype=jnp.float32)[None, :, None]          # (1, T_feat, 1)
    attn = ((t >= lo[:, None, :]) & (t < hi[:, None, :])).astype(jnp.float32)
    y_len = jnp.sum(wm, axis=-1)
    y_mask = (jnp.arange(T_feat, dtype=jnp.float32)[None, :] < y_len[:, None]).astype(jnp.float32)
    return jnp.einsum("bct,bft->bcf", x, attn) * y_mask[:, None, :]


if __name__ == "__main__":
    key = jax.random.PRNGKey(0)
    B, C, T_text = 2, 32, 8
    k1, k2 = jax.random.split(key)
    x = jax.random.normal(k1, (B, C, T_text), dtype=jnp.float32)
    # Integer-valued durations in [1, 4], as floats (typical regulator input).
    w = jax.random.randint(k2, (B, T_text), 1, 5).astype(jnp.float32)
    # Mask out the last two tokens of the second sequence.
    x_mask = jnp.ones((B, T_text), jnp.float32).at[1, 6:].set(0.0)

    # Path 1: y_mask derived from durations.
    out = duplicate_by_duration(x, w, x_mask=x_mask)
    out = jax.block_until_ready(out)
    ref = _reference(x, w, x_mask, out.shape[-1])
    assert out.shape == ref.shape, (out.shape, ref.shape)
    assert jnp.allclose(out, ref, atol=1e-4, rtol=1e-4), "mismatch vs reference (y_mask=None)"

    # Path 2: explicit (prefix) y_mask shorter than the total duration.
    T_feat = out.shape[-1]
    y_len2 = jnp.minimum(jnp.ceil(jnp.sum(w * x_mask, axis=-1)), float(T_feat - 3))
    y_mask2 = (jnp.arange(T_feat, dtype=jnp.float32)[None, :] < y_len2[:, None]).astype(jnp.float32)
    out2 = jax.block_until_ready(duplicate_by_duration(x, w, x_mask=x_mask, y_mask=y_mask2))
    ref2 = ref * y_mask2[:, None, :]
    assert jnp.allclose(out2, ref2, atol=1e-4, rtol=1e-4), "mismatch vs reference (explicit y_mask)"

    print("KERNEL_OK")
</pallas_src>

<mosaic_0001>
module attributes {stable_mosaic.version = 11 : i64} {
  func.func @_dup_by_duration_kernel(%arg0: i32, %arg1: i32, %arg2: memref<2xi32, #tpu.memory_space<smem>>, %arg3: memref<1x32x8xf32, #tpu.memory_space<vmem>>, %arg4: memref<1x8x2xf32, #tpu.memory_space<vmem>>, %arg5: memref<1x32x128xf32, #tpu.memory_space<vmem>>) attributes {dimension_semantics = [#tpu.dimension_semantics<parallel>, #tpu.dimension_semantics<parallel>], iteration_bounds = array<i64: 2, 1>, scalar_prefetch = 1 : i64, scratch_operands = 0 : i64, tpu.core_type = #tpu.core_type<tc>, window_params = [{transform_indices = @transform_0, window_bounds = array<i64: 1, 32, 8>}, {transform_indices = @transform_1, window_bounds = array<i64: 1, 8, 2>}, {transform_indices = @transform_2, window_bounds = array<i64: 1, 32, 128>}]} {
    %c128_i32 = arith.constant 128 : i32
    %0 = arith.muli %arg1, %c128_i32 : i32
    %1 = arith.index_cast %arg0 : i32 to index
    %2 = memref.load %arg2[%1] : memref<2xi32, #tpu.memory_space<smem>>
    %3 = arith.cmpi sge, %0, %2 : i32
    %4 = arith.extui %3 : i1 to i32
    %c0_i32 = arith.constant 0 : i32
    %5 = arith.cmpi ne, %4, %c0_i32 : i32
    scf.if %5 {
      %cst = arith.constant 0.000000e+00 : f32
      %11 = vector.broadcast %cst : f32 to vector<1x32x128xf32>
      %c0 = arith.constant 0 : index
      %c0_1 = arith.constant 0 : index
      %c0_2 = arith.constant 0 : index
      %12 = vector.load %arg5[%c0, %c0_1, %c0_2] : memref<1x32x128xf32, #tpu.memory_space<vmem>>, vector<1x32x128xf32>
      tpu.vector_store %arg5[%c0, %c0_1, %c0_2], %11 {strides = array<i32>} : memref<1x32x128xf32, #tpu.memory_space<vmem>>, vector<1x32x128xf32>,
    } else {
    }
    %6 = arith.index_cast %arg0 : i32 to index
    %7 = memref.load %arg2[%6] : memref<2xi32, #tpu.memory_space<smem>>
    %8 = arith.cmpi slt, %0, %7 : i32
    %9 = arith.extui %8 : i1 to i32
    %c0_i32_0 = arith.constant 0 : i32
    %10 = arith.cmpi ne, %9, %c0_i32_0 : i32
    scf.if %10 {
      %c0 = arith.constant 0 : index
      %c0_1 = arith.constant 0 : index
      %c0_2 = arith.constant 0 : index
      %11 = vector.load %arg3[%c0, %c0_1, %c0_2] : memref<1x32x8xf32, #tpu.memory_space<vmem>>, vector<1x32x8xf32>
      %12 = vector.shape_cast %11 : vector<1x32x8xf32> to vector<32x8xf32>
      %c0_3 = arith.constant 0 : index
      %c0_4 = arith.constant 0 : index
      %c0_5 = arith.constant 0 : index
      %13 = vector.load %arg4[%c0_3, %c0_4, %c0_5] : memref<1x8x2xf32, #tpu.memory_space<vmem>>, vector<1x8x2xf32>
      %14 = vector.shape_cast %13 : vector<1x8x2xf32> to vector<8x2xf32>
      %15 = vector.extract_strided_slice %14 {offsets = [0, 0], sizes = [8, 1], strides = [1, 1]} : vector<8x2xf32> to vector<8x1xf32>
      %16 = vector.extract_strided_slice %14 {offsets = [0, 1], sizes = [8, 1], strides = [1, 1]} : vector<8x2xf32> to vector<8x1xf32>
      %17 = tpu.iota {dimensions = array<i32: 1>} : vector<1x128xi32>
      %18 = vector.broadcast %0 : i32 to vector<1x128xi32>
      %19 = arith.addi %17, %18 : vector<1x128xi32>
      %20 = arith.sitofp %19 : vector<1x128xi32> to vector<1x128xf32>
      %21 = vector.broadcast %20 : vector<1x128xf32> to vector<8x128xf32>
      %22 = vector.broadcast %15 : vector<8x1xf32> to vector<8x128xf32>
      %23 = arith.cmpf oge, %21, %22 : vector<8x128xf32>
      %24 = vector.broadcast %20 : vector<1x128xf32> to vector<8x128xf32>
      %25 = vector.broadcast %16 : vector<8x1xf32> to vector<8x128xf32>
      %26 = arith.cmpf olt, %24, %25 : vector<8x128xf32>
      %27 = arith.andi %23, %26 : vector<8x128xi1>
      %28 = arith.extui %27 : vector<8x128xi1> to vector<8x128xi32>
      %29 = arith.sitofp %28 : vector<8x128xi32> to vector<8x128xf32>
      %cst = arith.constant dense<0.000000e+00> : vector<32x128xf32>
      %30 = tpu.matmul %12, %29, %cst {dimension_numbers = #tpu.dot_dimension_numbers<[1], [0], [0], [1], [0, 0, 1, 1], [], []>} : vector<32x8xf32>, vector<8x128xf32>, vector<32x128xf32> -> vector<32x128xf32>
      %c0_6 = arith.constant 0 : index
      %c0_7 = arith.constant 0 : index
      %c0_8 = arith.constant 0 : index
      %31 = vector.load %arg5[%c0_6, %c0_7, %c0_8] : memref<1x32x128xf32, #tpu.memory_space<vmem>>, vector<1x32x128xf32>
      %32 = vector.shape_cast %31 : vector<1x32x128xf32> to vector<32x128xf32>
      %33 = vector.shape_cast %30 : vector<32x128xf32> to vector<1x32x128xf32>
      tpu.vector_store %arg5[%c0_6, %c0_7, %c0_8], %33 {strides = array<i32>} : memref<1x32x128xf32, #tpu.memory_space<vmem>>, vector<1x32x128xf32>,
    } else {
    }
    return
  }
  func.func @transform_0(%arg0: i32, %arg1: i32, %arg2: memref<2xi32, #tpu.memory_space<smem>>) -> (i32, i32, i32) {
    %c0_i32 = arith.constant 0 : i32
    %c0_i32_0 = arith.constant 0 : i32
    %c0_i32_1 = arith.constant 0 : i32
    return %arg0, %c0_i32, %c0_i32_0 : i32, i32, i32
  }
  func.func @transform_1(%arg0: i32, %arg1: i32, %arg2: memref<2xi32, #tpu.memory_space<smem>>) -> (i32, i32, i32) {
    %c0_i32 = arith.constant 0 : i32
    %c0_i32_0 = arith.constant 0 : i32
    %c0_i32_1 = arith.constant 0 : i32
    return %arg0, %c0_i32, %c0_i32_0 : i32, i32, i32
  }
  func.func @transform_2(%arg0: i32, %arg1: i32, %arg2: memref<2xi32, #tpu.memory_space<smem>>) -> (i32, i32, i32) {
    %c0_i32 = arith.constant 0 : i32
    %c0_i32_0 = arith.constant 0 : i32
    return %arg0, %c0_i32, %arg1 : i32, i32, i32
  }
}

</mosaic_0001>

<llo_original>
// kernel: tpu_custom_call.1
$region0: #{tpu_custom_call.1}
  #allocation0 [shape = 'u32[]', space=smem, size = 0x4, offset = 0x4, fixed_abs, tag = 'smem constant byte address 0x4 - core index']
  #allocation1 [shape = 'u32[72,128]{1,0:T(1,128)}', space=vmem, size = 0x9000, scoped, tag = 'internal scratch']
  #allocation2 [shape = 's32[1]{0}', space=sflag, size = 0x4, scoped, tag = 'scoped memory for tpu_custom_call.1']
  #allocation3 [shape = 'u8[512]{0}', space=smem, size = 0x200, scoped, tag = 'prefetched SMEM operand 0']
  %s0 = inlined_call_operand.vmem [shape: s32[2], index: 0, kind: input, shape index: {}]
  %s1 = inlined_call_operand.vmem [shape: f32[2,32,8], index: 1, kind: input, shape index: {}]
  %s2 = inlined_call_operand.vmem [shape: f32[2,8,2], index: 2, kind: input, shape index: {}]
  %s3 = inlined_call_operand.hbm [shape: f32[2,32,128], index: 3, kind: output, shape index: {}]
  %s4 = sld [smem:[#allocation0]]
  $region49: #{tpu_custom_call.1} parent=0
    _
  %s6 = ssub.s32 1, %s4
  %s7 = scalar_select 0, %s6, %s4
  %s9 = sshll.u32 %s0, 4
  %s10 = int_to_ptr.vmem [resolvable:$true] %s9
  %12 = dma.vmem_to_smem %s10, 16, [#allocation3], [#allocation2]
  %14 = dma.done [#allocation2], 16
  %15 = sfence
  $region1: #{tpu_custom_call.1} parent=0
    #allocation4 [shape = 'u8[32768]{0}', space=vmem, size = 0x8000, scoped, tag = 'output window, operand 0']
    #allocation5 [shape = 's32[2]{0}', space=sflag, size = 0x8, scoped, tag = 'scoped memory for tpu_custom_call.1']
    %16 = vsyncpa [#allocation5], 0
    %s17 = scalar_lea.sflag [#allocation5], 1
    %18 = vsyncpa %s17, 0
    loop: start=0, step=1, limit=4
    $region2: #{tpu_custom_call.1} parent=1 // loop_pre_header
      _
    $region3: #{tpu_custom_call.1} parent=1 // loop_header
      %s20 = sphi 0, %s24
      %p21 = scmp.ge.s32.totalorder %s20, 4
      %s27 = sphi 0, %s39
      %s28 = sphi 0, %s35
      %s29 = sphi 0, %s27
      %s30 = sphi 0, %s28
      %s31 = sphi 0, %s29
      %s32 = sphi 0, %s30
      %s42 = sphi 0, %s44
      %s45 = sphi 0, %s42
      %s46 = sphi 0, %s45
      %s62 = sphi 0, %s46
      %s68 = sphi 0, %s70
      %s71 = sphi 0, %s68
      %s72 = sphi 0, %s71
      %s88 = sphi 0, %s72
      %s96 = sphi 0, %s98
      %s99 = sphi 0, %s96
      %s100 = sphi 0, %s99
      %s116 = sphi 0, %s100
    $region4: #{tpu_custom_call.1} parent=1 // loop_header_branch
      %23 = sbr.rel (%p21) target = $region8
    $region5: #{tpu_custom_call.1} parent=1 // loop_body
      %s25 = ssub.s32 %s20, 1
      %s26 = ssub.s32 %s20, 2
      %s33 = sadd.s32 1, %s28
      %p34 = scmp.ge.s32.totalorder %s33, 1
      %s35 = scalar_select %p34, 0, %s33
      %s36 = sadd.s32 1, %s27
      %s37 = scalar_select %p34, %s36, %s27
      %p38 = scmp.ge.s32.totalorder %s37, 2
      %s39 = scalar_select %p38, 0, %s37
      %s40 = ssub.s32 %s27, %s39
      %p41 = scmp.eq.s32.totalorder %s40, 0
      %s43 = sadd.s32 %s42, 1
      %s44 = scalar_select %p41, %s42, %s43
      %p47 = pneg %p41
      %p48 = scmp.eq.s32.totalorder %s20, 1
      %p49 = por %p47, %p48
      %p50 = scmp.ne.s32.totalorder %s42, %s45
      %p51 = scmp.eq.s32.totalorder %s20, 0
      %p52 = por %p50, %p51
      %p53 = scmp.ne.s32.totalorder %s42, %s45
      %p54 = scmp.eq.s32.totalorder %s25, 1
      %p55 = por %p53, %p54
      %p56 = scmp.ne.s32.totalorder %s45, %s46
      %p57 = scmp.eq.s32.totalorder %s25, 0
      %p58 = por %p56, %p57
      %p59 = scmp.ne.s32.totalorder %s45, %s46
      %p60 = scmp.eq.s32.totalorder %s26, 1
      %p61 = por %p59, %p60
      %p63 = scmp.ne.s32.totalorder %s46, %s62
      %p64 = scmp.eq.s32.totalorder %s26, 0
      %p65 = por %p63, %p64
      %s66 = ssub.s32 %s27, %s39
      %p67 = scmp.eq.s32.totalorder %s66, 0
      %s69 = sadd.s32 %s68, 1
      %s70 = scalar_select %p67, %s68, %s69
      %p73 = pneg %p67
      %p74 = scmp.eq.s32.totalorder %s20, 1
      %p75 = por %p73, %p74
      %p76 = scmp.ne.s32.totalorder %s68, %s71
      %p77 = scmp.eq.s32.totalorder %s20, 0
      %p78 = por %p76, %p77
      %p79 = scmp.ne.s32.totalorder %s68, %s71
      %p80 = scmp.eq.s32.totalorder %s25, 1
      %p81 = por %p79, %p80
      %p82 = scmp.ne.s32.totalorder %s71, %s72
      %p83 = scmp.eq.s32.totalorder %s25, 0
      %p84 = por %p82, %p83
      %p85 = scmp.ne.s32.totalorder %s71, %s72
      %p86 = scmp.eq.s32.totalorder %s26, 1
      %p87 = por %p85, %p86
      %p89 = scmp.ne.s32.totalorder %s72, %s88
      %p90 = scmp.eq.s32.totalorder %s26, 0
      %p91 = por %p89, %p90
      %s92 = ssub.s32 %s27, %s39
      %s93 = ssub.s32 %s28, %s35
      %s94 = sor.u32 %s92, %s93
      %p95 = scmp.eq.s32.totalorder %s94, 0
      %s97 = sadd.s32 %s96, 1
      %s98 = scalar_select %p95, %s96, %s97
      %p101 = pneg %p95
      %p102 = scmp.eq.s32.totalorder %s20, 1
      %p103 = por %p101, %p102
      %p104 = scmp.ne.s32.totalorder %s96, %s99
      %p105 = scmp.eq.s32.totalorder %s20, 0
      %p106 = por %p104, %p105
      %p107 = scmp.ne.s32.totalorder %s96, %s99
      %p108 = scmp.eq.s32.totalorder %s25, 1
      %p109 = por %p107, %p108
      %p110 = scmp.ne.s32.totalorder %s99, %s100
      %p111 = scmp.eq.s32.totalorder %s25, 0
      %p112 = por %p110, %p111
      %p113 = scmp.ne.s32.totalorder %s99, %s100
      %p114 = scmp.eq.s32.totalorder %s26, 1
      %p115 = por %p113, %p114
      %p117 = scmp.ne.s32.totalorder %s100, %s116
      %p118 = scmp.eq.s32.totalorder %s26, 0
      %p119 = por %p117, %p118
      %p120 = scmp.le.s32.totalorder 1, %s20
      %p121 = scmp.lt.s32.totalorder %s20, 3
      %p122 = pnand %p120, %p121
      %p123 = pneg %p122
      // Predicated region
      $region9: #{tpu_custom_call.1} parent=5 // pred_check
        _
      $region10: #{tpu_custom_call.1} parent=5 // pred_check_branch
        %125 = sbr.rel (%p122) target = $region12
      $region11: #{tpu_custom_call.1} parent=5 // pred_region
        %s126 = ssub.s32 %s20, 1
      $region12: #{tpu_custom_call.1} parent=5 // pred_fallthru
        _
      %p127 = scmp.lt.s32.totalorder %s20, 2
      // Predicated region
      $region13: #{tpu_custom_call.1} parent=5 // pred_check
        %p128 = pneg %p127
      $region14: #{tpu_custom_call.1} parent=5 // pred_check_branch
        %130 = sbr.rel (%p128) target = $region16
      $region15: #{tpu_custom_call.1} parent=5 // pred_region
        // Predicated region
        $region17: #{tpu_custom_call.1} parent=15 // pred_check
          %p131 = pneg %p52
        $region18: #{tpu_custom_call.1} parent=15 // pred_check_branch
          %133 = sbr.rel (%p131) target = $region20
        $region19: #{tpu_custom_call.1} parent=15 // pred_region
          %p134 = scmp.lt.s32.totalorder %s27, 1
          %s135 = scalar_select %p134, %s27, 1
          %s136 = smul.addr %s135, 4
          %s137 = smul.addr %s136, 8
          %s138 = scalar_lea.vmem %s1, %s137
        $region20: #{tpu_custom_call.1} parent=15 // pred_fallthru
          _
        // Predicated region
        $region21: #{tpu_custom_call.1} parent=15 // pred_check
          %p139 = pneg %p78
        $region22: #{tpu_custom_call.1} parent=15 // pred_check_branch
          %141 = sbr.rel (%p139) target = $region24
        $region23: #{tpu_custom_call.1} parent=15 // pred_region
          %p142 = scmp.lt.s32.totalorder %s27, 1
          %s143 = scalar_select %p142, %s27, 1
          %s144 = smul.addr %s143, 8
          %s145 = scalar_lea.vmem %s2, %s144
        $region24: #{tpu_custom_call.1} parent=15 // pred_fallthru
          _
      $region16: #{tpu_custom_call.1} parent=5 // pred_fallthru
        _
      %p146 = scmp.le.s32.totalorder 1, %s20
      %p147 = scmp.lt.s32.totalorder %s20, 3
      %p148 = pnand %p146, %p147
      %p149 = pneg %p148
      // Predicated region
      $region25: #{tpu_custom_call.1} parent=5 // pred_check
        _
      $region26: #{tpu_custom_call.1} parent=5 // pred_check_branch
        %151 = sbr.rel (%p148) target = $region28
      $region27: #{tpu_custom_call.1} parent=5 // pred_region
        %s152 = ssub.s32 %s20, 1
        %p153 = scmp.lt.s32.totalorder %s29, 1
        %s154 = scalar_select %p153, %s29, 1
        %s155 = smul.addr %s154, 4
        %s156 = smul.addr %s155, 8
        %s157 = scalar_lea.vmem %s1, %s156
        %p158 = pneg %p58
        %p159 = pneg %p55
        %p160 = scmp.lt.s32.totalorder %s29, 1
        %s161 = scalar_select %p160, %s29, 1
        %s162 = smul.addr %s161, 8
        %s163 = scalar_lea.vmem %s2, %s162
        %p164 = pneg %p84
        %p165 = pneg %p81
        %p166 = pneg %p112
        %p167 = pneg %p109
        %s168 = sand.u32 %s99, 1
        %s169 = scalar_lea.sflag [#allocation5], %s168
        %s170 = sand.u32 %s99, 1
        %s171 = smul.addr %s170, 32
        %s172 = scalar_lea.vmem [#allocation4], %s171
        %p173 = scmp.lt.s32.totalorder %s29, 1
        %s174 = scalar_select %p173, %s29, 1
        %s175 = smul.addr %s174, 4
        %s176 = smul.addr %s175, 8
        %s177 = scalar_lea.vmem %s1, %s176
        %p178 = scmp.lt.s32.totalorder %s29, 1
        %s179 = scalar_select %p178, %s29, 1
        %s180 = smul.addr %s179, 8
        %s181 = scalar_lea.vmem %s2, %s180
        %s182 = smul.u32 %s30, 128
        %s183 = sld [smem:[#allocation3 + %s29]]
        %p184 = scmp.ge.s32.totalorder %s182, %s183
        // Predicated region
        $region29: #{tpu_custom_call.1} parent=27 // pred_check
          %p185 = pneg %p184
        $region30: #{tpu_custom_call.1} parent=27 // pred_check_branch
          %187 = sbr.rel (%p185) target = $region32
        $region31: #{tpu_custom_call.1} parent=27 // pred_region
          %188 = vst [vmem:[%s172] sm:$0xff] 0.0
          %189 = vst [vmem:[%s172 + $0x8] sm:$0xff] 0.0
          %190 = vst [vmem:[%s172 + $0x10] sm:$0xff] 0.0
          %191 = vst [vmem:[%s172 + $0x18] sm:$0xff] 0.0
        $region32: #{tpu_custom_call.1} parent=27 // pred_fallthru
          _
        %s192 = sld [smem:[#allocation3 + %s29]]
        %p193 = scmp.lt.s32.totalorder %s182, %s192
        // Predicated region
        $region33: #{tpu_custom_call.1} parent=27 // pred_check
          %p194 = pneg %p193
        $region34: #{tpu_custom_call.1} parent=27 // pred_check_branch
          %196 = sbr.rel (%p194) target = $region36
        $region35: #{tpu_custom_call.1} parent=27 // pred_region
          %v197 = vld [vmem:[%s177] sm:$0xff]
          %v198 = vld [vmem:[%s177 + $0x8] sm:$0xff]
          %v199 = vld [vmem:[%s177 + $0x10] sm:$0xff]
          %v200 = vld [vmem:[%s177 + $0x18] sm:$0xff]
          %v201 = vld [vmem:[%s181] sm:$0xff]
          %v202 = vlaneseq
          %v203 = vand.u32 %v202, 127
          %v204 = vstv %s182
          %v205 = vadd.s32 %v203, %v204
          %v206 = vcvt.s32.f32 %v205
          %208 = vset.pattern.permute.xlu0 0
          %209 = vperm.xlu0 %208, %v201
          %v210 = vpop.permute.xlu0 %209
          %vm212 = vcmp.ge.f32.partialorder %v206, %v210
          %213 = vset.pattern.permute.xlu0 1
          %214 = vperm.xlu0 %213, %v201
          %v215 = vpop.permute.xlu0 %214
          %vm217 = vcmp.lt.f32.partialorder %v206, %v215
          %vm218 = vmand %vm212, %vm217
          %v219 = vsel %vm218, 1, 0
          %v220 = vcvt.s32.f32 %v219
          %vm221 = vcmask 64512
          %v223 = vsel %vm221, %v197, 0
          %v226 = vsel %vm221, %v198, 0
          %v229 = vsel %vm221, %v199, 0
          %v232 = vsel %vm221, %v200, 0
          %234 = vmatpush.msra.mxu0 0.0
          %235 = vmatpush.msra.mxu0 0.0
          %236 = vmatpush.msra.mxu0 0.0
          %237 = vmatpush.msra.mxu0 0.0
          %238 = vmatpush.msra.mxu0 0.0
          %239 = vmatpush.msra.mxu0 0.0
          %240 = vmatpush.msra.mxu0 0.0
          %241 = vmatpush.msra.mxu0 0.0
          %242 = vmatpush.msra.mxu0 0.0
          %243 = vmatpush.msra.mxu0 0.0
          %244 = vmatpush.msra.mxu0 0.0
          %245 = vmatpush.msra.mxu0 0.0
          %246 = vmatpush.msra.mxu0 0.0
          %247 = vmatpush.msra.mxu0 0.0
          %248 = vmatpush.msra.mxu0 0.0
          %249 = vmatpush.msra.mxu0 %v220
          %250 = vmatmul.f32.gmra.mxu0 %v223
          %v251 = vpop.f32.mrf.mxu0
          %v252 = vadd.f32 0.0, %v251
          %253 = vmatmul.f32.gmra.mxu0 %v226
          %v254 = vpop.f32.mrf.mxu0
          %v255 = vadd.f32 0.0, %v254
          %256 = vmatmul.f32.gmra.mxu0 %v229
          %v257 = vpop.f32.mrf.mxu0
          %v258 = vadd.f32 0.0, %v257
          %259 = vmatmul.f32.gmra.mxu0 %v232
          %v260 = vpop.f32.mrf.mxu0
          %v261 = vadd.f32 0.0, %v260
          %262 = vdwg.mxu0
          %263 = vst [vmem:[%s172] sm:$0xff] %v252
          %264 = vst [vmem:[%s172 + $0x8] sm:$0xff] %v255
          %265 = vst [vmem:[%s172 + $0x10] sm:$0xff] %v258
          %266 = vst [vmem:[%s172 + $0x18] sm:$0xff] %v261
        $region36: #{tpu_custom_call.1} parent=27 // pred_fallthru
          _
        %s267 = sand.u32 %s99, 1
        %s268 = scalar_lea.sflag [#allocation5], %s267
        %s269 = sand.u32 %s99, 1
        %s270 = smul.addr %s269, 32
        %s271 = scalar_lea.vmem [#allocation4], %s270
        // Predicated region
        $region37: #{tpu_custom_call.1} parent=27 // pred_check
          %p272 = pneg %p109
        $region38: #{tpu_custom_call.1} parent=27 // pred_check_branch
          %274 = sbr.rel (%p272) target = $region40
        $region39: #{tpu_custom_call.1} parent=27 // pred_region
          %276 = vsyncadd %s268, 0
          %s277 = smul.addr %s29, 4
          %s278 = sadd.s32 %s30, %s277
          %s279 = smul.addr %s278, 8
          %s280 = scalar_lea.hbm %s3, %s279
          %s281 = sshll.u32 %s271, 4
          %s282 = int_to_ptr.vmem [resolvable:$true] %s281
          %s283 = sshll.u32 %s280, 4
          %s284 = int_to_ptr.hbm [resolvable:$true] %s283
          %289 = dma.vmem_to_hbm [thread:$0]  %s282, 512, %s284, %s268, 128, 128, 8
        $region40: #{tpu_custom_call.1} parent=27 // pred_fallthru
          _
      $region28: #{tpu_custom_call.1} parent=5 // pred_fallthru
        _
      %p290 = scmp.le.s32.totalorder 2, %s20
      // Predicated region
      $region41: #{tpu_custom_call.1} parent=5 // pred_check
        %p291 = pneg %p290
      $region42: #{tpu_custom_call.1} parent=5 // pred_check_branch
        %293 = sbr.rel (%p291) target = $region44
      $region43: #{tpu_custom_call.1} parent=5 // pred_region
        %s294 = ssub.s32 %s20, 2
        // Predicated region
        $region45: #{tpu_custom_call.1} parent=43 // pred_check
          %p295 = pneg %p115
        $region46: #{tpu_custom_call.1} parent=43 // pred_check_branch
          %297 = sbr.rel (%p295) target = $region48
        $region47: #{tpu_custom_call.1} parent=43 // pred_region
          %s298 = sand.u32 %s100, 1
          %s299 = scalar_lea.sflag [#allocation5], %s298
          %s300 = sand.u32 %s100, 1
          %s301 = smul.addr %s300, 32
          %s302 = scalar_lea.vmem [#allocation4], %s301
          %304 = dma.done %s299, 512
        $region48: #{tpu_custom_call.1} parent=43 // pred_fallthru
          _
      $region44: #{tpu_custom_call.1} parent=5 // pred_fallthru
        _
    $region6: #{tpu_custom_call.1} parent=1 // loop_footer
      %s24 = sadd.s32 1, %s20
    $region7: #{tpu_custom_call.1} parent=1 // loop_footer_branch
      %19 = sbr.rel target = $region3
    $region8: #{tpu_custom_call.1} parent=1 // loop_exit
      _
    %305 = vsyncpa [#allocation5], 1
    %s306 = scalar_lea.sflag [#allocation5], 1
    %307 = vsyncpa %s306, 1

</llo_original>
